<compile_context>
chip_gen: v7x
topology: tpu7x:2x2x1
jax: 0.10.0
libtpu: 0.0.40
codegen_flags: <defaults>
</compile_context>

<pallas_src>
import functools
import math

import jax
import jax.numpy as jnp
from jax.experimental import pallas as pl
from jax.experimental.pallas import tpu as pltpu


# ---------------------------------------------------------------------------
# Hardware / tiling helpers
# ---------------------------------------------------------------------------

@functools.lru_cache(maxsize=None)
def _vmem_limit_bytes():
    """Scoped-VMEM limit: ~3/4 of physical VMEM (96 MiB v5e/v6e, 48 MiB v7x)."""
    try:
        cap = int(pltpu.get_tpu_info().vmem_capacity_bytes)
    except Exception:  # conservative fallback if the query is unavailable
        cap = 64 * 1024 * 1024
    return int(max(32 * 1024 * 1024, min((cap * 3) // 4, 96 * 1024 * 1024)))


def _sublane_granularity(itemsize):
    """Rows per native sublane tile: f32 -> 8, bf16/f16 -> 16, int8/fp8 -> 32."""
    return max(8, 32 // int(itemsize))


def _lane_pack_factor(n_rows, n_feat):
    """Pack factor p so n_feat * p is a multiple of 128 (dense 128-lane vregs)."""
    if n_feat % 128 == 0:
        return 1
    p = 128 // math.gcd(n_feat, 128)          # always a power of two
    if p > 1 and n_rows % p == 0:
        return p
    # TODO(synk): pad N up to a multiple of p (zero pad rows are cheap to
    # correct analytically) instead of falling back to narrow, masked stores.
    return 1


def _pick_tile_rows(n_rows, n_lanes, itemsize, *, n_buffers,
                    vmem_limit_bytes, max_buffer_bytes=8 * 1024 * 1024):
    """Largest dtype-aligned row tile that fits this pass's VMEM budget."""
    itemsize = int(itemsize)
    g = _sublane_granularity(itemsize)
    bytes_per_row = n_lanes * itemsize
    budget = max(vmem_limit_bytes - (2 << 20), 4 << 20)   # headroom for scratch
    rows = min(budget // (n_buffers * bytes_per_row),
               max_buffer_bytes // bytes_per_row)
    rows = max(g, int(rows))
    if rows >= n_rows:
        return n_rows                          # single full-extent block is legal
    return max(g, (rows // g) * g)             # partial tiles must be g-aligned


# ---------------------------------------------------------------------------
# Kernels
# ---------------------------------------------------------------------------

def _stats_kernel(x_ref, shift_ref, sum_ref, ssq_ref, *, n_valid_rows,
                  last_tile, tiles_per_split, needs_mask):
    """Accumulate per-lane sum / sum-of-squares of (x - shift) over row tiles."""
    c = pl.program_id(0)                       # TensorCore split (v7x megacore)
    i = pl.program_id(1)                       # row-tile index within the split

    @pl.when(i == 0)
    def _():
        sum_ref[...] = jnp.zeros_like(sum_ref)
        ssq_ref[...] = jnp.zeros_like(ssq_ref)

    def accumulate(xs):
        sum_ref[0:1, :] += jnp.sum(xs, axis=0, keepdims=True)
        ssq_ref[0:1, :] += jnp.sum(xs * xs, axis=0, keepdims=True)

    g = c * tiles_per_split + i                # global tile index

    if needs_mask:
        # Only the global last tile is ragged; full tiles skip the mask math.
        @pl.when(g != last_tile)
        def _():
            accumulate(x_ref[...].astype(jnp.float32) - shift_ref[...])

        @pl.when(g == last_tile)
        def _():
            xs = x_ref[...].astype(jnp.float32) - shift_ref[...]
            row = g * x_ref.shape[0] + jax.lax.broadcasted_iota(
                jnp.int32, x_ref.shape, 0)
            accumulate(jnp.where(row < n_valid_rows, xs, 0.0))
    else:
        accumulate(x_ref[...].astype(jnp.float32) - shift_ref[...])


def _normalize_kernel(x_ref, scale_ref, shift_ref, y_ref):
    """y = x * scale + shift with per-feature (1, FP) scale/shift."""
    y_ref[...] = (x_ref[...].astype(jnp.float32) * scale_ref[...]
                  + shift_ref[...]).astype(y_ref.dtype)


def _fused_kernel(x_ref, w_ref, b_ref, y_ref, mean_ref, var_ref, *, eps, inv_n):
    """Whole-array-in-VMEM path: centered stats + normalize in one kernel."""
    x = x_ref[...].astype(jnp.float32)
    mean = jnp.sum(x, axis=0, keepdims=True) * inv_n
    d = x - mean
    var = jnp.sum(d * d, axis=0, keepdims=True) * inv_n
    scale = w_ref[...] * jax.lax.rsqrt(var + eps)
    y_ref[...] = (d * scale + b_ref[...]).astype(y_ref.dtype)
    mean_ref[...] = mean
    var_ref[...] = var


# ---------------------------------------------------------------------------
# pallas_call wrappers
# ---------------------------------------------------------------------------

def _batch_sums(xp, shift_p, tile_rows, vmem_limit_bytes):
    np_, fp = xp.shape
    num_tiles = pl.cdiv(np_, tile_rows)
    # Shard the reduction over both TensorCores on v7x when it splits evenly;
    # harmless (sequential) on single-core v5e/v6e.
    n_split = 2 if (num_tiles >= 4 and num_tiles % 2 == 0) else 1
    tps = num_tiles // n_split
    kernel = functools.partial(
        _stats_kernel, n_valid_rows=np_, last_tile=num_tiles - 1,
        tiles_per_split=tps, needs_mask=(np_ % tile_rows) != 0)
    return pl.pallas_call(
        kernel,
        grid=(n_split, tps),
        in_specs=[pl.BlockSpec((tile_rows, fp), lambda c, i: (c * tps + i, 0)),
                  pl.BlockSpec((1, fp), lambda c, i: (0, 0))],
        out_specs=(pl.BlockSpec((8, fp), lambda c, i: (c, 0)),
                   pl.BlockSpec((8, fp), lambda c, i: (c, 0))),
        out_shape=(jax.ShapeDtypeStruct((n_split * 8, fp), jnp.float32),
                   jax.ShapeDtypeStruct((n_split * 8, fp), jnp.float32)),
        compiler_params=pltpu.CompilerParams(
            dimension_semantics=("parallel", "arbitrary"),
            vmem_limit_bytes=vmem_limit_bytes),
    )(xp, shift_p)


def _apply_scale_shift(xp, scale_p, shift_p, tile_rows, out_dtype,
                       vmem_limit_bytes):
    np_, fp = xp.shape
    num_tiles = pl.cdiv(np_, tile_rows)
    return pl.pallas_call(
        _normalize_kernel,
        grid=(num_tiles,),
        in_specs=[pl.BlockSpec((tile_rows, fp), lambda i: (i, 0)),
                  pl.BlockSpec((1, fp), lambda i: (0, 0)),
                  pl.BlockSpec((1, fp), lambda i: (0, 0))],
        out_specs=pl.BlockSpec((tile_rows, fp), lambda i: (i, 0)),
        out_shape=jax.ShapeDtypeStruct((np_, fp), out_dtype),
        compiler_params=pltpu.CompilerParams(
            dimension_semantics=("parallel",),
            vmem_limit_bytes=vmem_limit_bytes),
    )(xp, scale_p, shift_p)


def _fused_batch_norm(x, w2d, b2d, eps, vmem_limit_bytes):
    n, f = x.shape
    kernel = functools.partial(_fused_kernel, eps=float(eps), inv_n=1.0 / float(n))
    return pl.pallas_call(
        kernel,
        out_shape=(jax.ShapeDtypeStruct((n, f), x.dtype),
                   jax.ShapeDtypeStruct((1, f), jnp.float32),
                   jax.ShapeDtypeStruct((1, f), jnp.float32)),
        compiler_params=pltpu.CompilerParams(
            vmem_limit_bytes=vmem_limit_bytes),
    )(x, w2d, b2d)


# ---------------------------------------------------------------------------
# Public entry point
# ---------------------------------------------------------------------------

def graph_aware_batch_norm(x, weight, bias, running_mean, running_var, *,
                           eps=1e-5, momentum=0.1, training=True,
                           use_aggregate_statistics=True, tile_rows=None):
    """Returns (out, new_running_mean, new_running_var) for 2D x of shape (N, F)."""
    # TODO(synk): the PyTorch module also accepts 3D (N, M, F) inputs and keeps a
    # num_batches_tracked counter; only the 2D (nodes, features) forward is here.
    assert x.ndim == 2, "kernel implements the 2D (nodes, features) case"
    n, f = x.shape
    assert n > 0, "empty node batch (division by zero in mean/var)"

    itemsize = int(jnp.dtype(x.dtype).itemsize)
    g = _sublane_granularity(itemsize)
    vmem_limit = _vmem_limit_bytes()

    w32 = weight.astype(jnp.float32)
    b32 = bias.astype(jnp.float32)
    rm32 = running_mean.astype(jnp.float32)
    rv32 = running_var.astype(jnp.float32)

    use_batch_stats = training or not use_aggregate_statistics

    # Fused fast path: x resident in VMEM -> one kernel does stats + normalize
    # (one HBM read + one write) with an exactly-centered variance.
    fused_bytes = n * f * (2 * itemsize + 8) + 64 * f
    fused_budget = min((vmem_limit * 2) // 5, 32 * 1024 * 1024)
    if use_batch_stats and tile_rows is None and fused_bytes <= fused_budget:
        y, bm2d, bv2d = _fused_batch_norm(
            x, w32.reshape(1, f), b32.reshape(1, f), eps, vmem_limit)
        batch_mean, batch_var = bm2d[0], bv2d[0]
    else:
        pack = _lane_pack_factor(n, f)
        np_, fp = n // pack, f * pack
        xp = x.reshape(np_, fp)                # free row-major metadata reshape

        if tile_rows is not None:
            tile = max(1, min(int(tile_rows), np_))
            if tile < np_:
                tile = min(np_, max(g, (tile // g) * g))
            tile_stats = tile_norm = tile
        else:
            tile_stats = _pick_tile_rows(np_, fp, itemsize, n_buffers=2,
                                         vmem_limit_bytes=vmem_limit)
            tile_norm = _pick_tile_rows(np_, fp, itemsize, n_buffers=4,
                                        vmem_limit_bytes=vmem_limit)

        if use_batch_stats:
            # Shifted-origin single pass: accumulate sum(x - rm), sum((x - rm)^2)
            # to reduce cancellation when |mean| >> std.
            shift0_p = jnp.tile(rm32, pack).reshape(1, fp)
            s, ss = _batch_sums(xp, shift0_p, tile_stats, vmem_limit)
            # Fold per-core accumulator rows and lane-pack groups back to (F,).
            s = s.reshape(-1, pack, f).sum(axis=(0, 1))
            ss = ss.reshape(-1, pack, f).sum(axis=(0, 1))
            mean_shifted = s / n
            batch_mean = mean_shifted + rm32
            batch_var = jnp.maximum(ss / n - mean_shifted * mean_shifted, 0.0)
            mean, var = batch_mean, batch_var
        else:
            mean, var = rm32, rv32

        inv_std = jax.lax.rsqrt(var + eps)
        scale = w32 * inv_std
        shift = b32 - mean * scale
        scale_p = jnp.tile(scale, pack).reshape(1, fp)
        shift_p = jnp.tile(shift, pack).reshape(1, fp)
        y = _apply_scale_shift(xp, scale_p, shift_p, tile_norm, x.dtype,
                               vmem_limit).reshape(n, f)

    if training:
        # Matches the reference module exactly: running_var is updated with the
        # *biased* batch variance (sum/N), unlike torch.nn.BatchNorm.
        new_rm = (running_mean * (1.0 - momentum)
                  + momentum * batch_mean.astype(running_mean.dtype))
        new_rv = (running_var * (1.0 - momentum)
                  + momentum * batch_var.astype(running_var.dtype))
    else:
        new_rm, new_rv = running_mean, running_var
    return y, new_rm, new_rv


# ---------------------------------------------------------------------------
# Self-test
# ---------------------------------------------------------------------------

if __name__ == "__main__":
    key = jax.random.PRNGKey(0)
    eps, momentum = 1e-5, 0.1

    def reference(x, w, b, rm, rv, training, use_agg):
        n = x.shape[0]
        bm = jnp.sum(x, axis=0) / n
        bv = jnp.sum((x - bm) ** 2, axis=0) / n
        if training:
            mean, var = bm, bv
            new_rm = rm * (1 - momentum) + momentum * bm
            new_rv = rv * (1 - momentum) + momentum * bv
        elif use_agg:
            mean, var = rm, rv
            new_rm, new_rv = rm, rv
        else:
            mean, var = bm, bv
            new_rm, new_rv = rm, rv
        y = w * ((x - mean) / jnp.sqrt(var + eps)) + b
        return y, new_rm, new_rv

    def check(msg, got, want, atol=3e-5, rtol=3e-5):
        assert jnp.allclose(got, want, atol=atol, rtol=rtol), msg

    # Case 1: training, small graph -> fused resident-in-VMEM path.
    N, F = 64, 32
    k1, k2, key = jax.random.split(key, 3)
    x = jax.random.normal(k1, (N, F), dtype=jnp.float32)
    weight = jax.random.uniform(k2, (F,), dtype=jnp.float32)  # reset_parameters(): U[0,1)
    bias = jnp.zeros((F,), jnp.float32)
    rm = jnp.zeros((F,), jnp.float32)
    rv = jnp.ones((F,), jnp.float32)

    y, nrm, nrv = graph_aware_batch_norm(x, weight, bias, rm, rv, eps=eps,
                                         momentum=momentum, training=True)
    jax.block_until_ready((y, nrm, nrv))
    ry, rrm, rrv = reference(x, weight, bias, rm, rv, True, True)
    check("case1 y", y, ry)
    check("case1 running_mean", nrm, rrm)
    check("case1 running_var", nrv, rrv)

    # Case 2: training, streaming path with a ragged last tile (masked tile).
    N2 = 600
    k1, key = jax.random.split(key)
    x2 = jax.random.normal(k1, (N2, F), dtype=jnp.float32) * 2.0 + 0.5
    y2, nrm2, nrv2 = graph_aware_batch_norm(
        x2, weight, bias, rm, rv, eps=eps, momentum=momentum, training=True,
        tile_rows=64)  # packed view (150, 128); 150 = 2*64 + 22
    jax.block_until_ready((y2, nrm2, nrv2))
    ry2, rrm2, rrv2 = reference(x2, weight, bias, rm, rv, True, True)
    check("case2 y", y2, ry2)
    check("case2 running_mean", nrm2, rrm2)
    check("case2 running_var", nrv2, rrv2)

    # Case 3: eval with aggregate (running) statistics -> FMA-only stream.
    y3, _, _ = graph_aware_batch_norm(
        x2, weight, bias, nrm2, nrv2, eps=eps, momentum=momentum,
        training=False, use_aggregate_statistics=True)
    jax.block_until_ready(y3)
    ry3, _, _ = reference(x2, weight, bias, nrm2, nrv2, False, True)
    check("case3 y", y3, ry3)

    # Case 4: eval without aggregate statistics; F=40, N=100 -> pack fallback.
    F4, N4 = 40, 100
    k1, k2, key = jax.random.split(key, 3)
    x4 = jax.random.normal(k1, (N4, F4), dtype=jnp.float32)
    w4 = jax.random.uniform(k2, (F4,), dtype=jnp.float32)
    b4 = jnp.full((F4,), 0.25, jnp.float32)
    rm4 = jnp.zeros((F4,), jnp.float32)
    rv4 = jnp.ones((F4,), jnp.float32)
    y4, nrm4, nrv4 = graph_aware_batch_norm(
        x4, w4, b4, rm4, rv4, eps=eps, momentum=momentum, training=False,
        use_aggregate_statistics=False, tile_rows=32)
    jax.block_until_ready((y4, nrm4, nrv4))
    ry4, _, _ = reference(x4, w4, b4, rm4, rv4, False, False)
    check("case4 y", y4, ry4)
    check("case4 running_mean unchanged", nrm4, rm4)
    check("case4 running_var unchanged", nrv4, rv4)

    # Case 5: training, even tile count -> dual-core split of the stats pass,
    # with non-zero running_mean exercising the shifted-origin accumulation.
    N5 = 2048
    k1, k2, k3, key = jax.random.split(key, 4)
    x5 = jax.random.normal(k1, (N5, F), dtype=jnp.float32) * 2.0 + 0.5
    rm5 = jax.random.normal(k2, (F,), dtype=jnp.float32)
    rv5 = jax.random.uniform(k3, (F,), dtype=jnp.float32) + 0.5
    y5, nrm5, nrv5 = graph_aware_batch_norm(
        x5, weight, bias, rm5, rv5, eps=eps, momentum=momentum, training=True,
        tile_rows=128)  # packed view (512, 128) -> 4 tiles -> 2-way split
    jax.block_until_ready((y5, nrm5, nrv5))
    ry5, rrm5, rrv5 = reference(x5, weight, bias, rm5, rv5, True, True)
    check("case5 y", y5, ry5)
    check("case5 running_mean", nrm5, rrm5)
    check("case5 running_var", nrv5, rrv5)

    # Case 6: training, F=40 lane-packed 16x (lcm-based) into 640 lanes.
    N6 = 96
    k1, key = jax.random.split(key)
    x6 = jax.random.normal(k1, (N6, F4), dtype=jnp.float32) - 1.5
    y6, nrm6, nrv6 = graph_aware_batch_norm(
        x6, w4, b4, rm4, rv4, eps=eps, momentum=momentum, training=True,
        tile_rows=8)  # packed view (6, 640), single full-extent tile
    jax.block_until_ready((y6, nrm6, nrv6))
    ry6, rrm6, rrv6 = reference(x6, w4, b4, rm4, rv4, True, True)
    check("case6 y", y6, ry6)
    check("case6 running_mean", nrm6, rrm6)
    check("case6 running_var", nrv6, rrv6)

    print("KERNEL_OK")
</pallas_src>

<mosaic_0001>
module attributes {stable_mosaic.version = 11 : i64} {
  func.func @_fused_kernel(%arg0: memref<64x32xf32, #tpu.memory_space<vmem>>, %arg1: memref<1x32xf32, #tpu.memory_space<vmem>>, %arg2: memref<1x32xf32, #tpu.memory_space<vmem>>, %arg3: memref<64x32xf32, #tpu.memory_space<vmem>>, %arg4: memref<1x32xf32, #tpu.memory_space<vmem>>, %arg5: memref<1x32xf32, #tpu.memory_space<vmem>>) attributes {dimension_semantics = [], scalar_prefetch = 0 : i64, scratch_operands = 0 : i64, tpu.core_type = #tpu.core_type<tc>} {
    %c0 = arith.constant 0 : index
    %c0_0 = arith.constant 0 : index
    %0 = vector.load %arg0[%c0, %c0_0] : memref<64x32xf32, #tpu.memory_space<vmem>>, vector<64x32xf32>
    %cst = arith.constant dense<0.000000e+00> : vector<32xf32>
    %1 = vector.multi_reduction <add>, %0, %cst [0] : vector<64x32xf32> to vector<32xf32>
    %2 = vector.shape_cast %1 : vector<32xf32> to vector<1x32xf32>
    %cst_1 = arith.constant 1.562500e-02 : f32
    %3 = vector.broadcast %cst_1 : f32 to vector<1x32xf32>
    %4 = arith.mulf %2, %3 : vector<1x32xf32>
    %5 = vector.broadcast %4 : vector<1x32xf32> to vector<64x32xf32>
    %6 = arith.subf %0, %5 : vector<64x32xf32>
    %7 = arith.mulf %6, %6 : vector<64x32xf32>
    %cst_2 = arith.constant dense<0.000000e+00> : vector<32xf32>
    %8 = vector.multi_reduction <add>, %7, %cst_2 [0] : vector<64x32xf32> to vector<32xf32>
    %9 = vector.shape_cast %8 : vector<32xf32> to vector<1x32xf32>
    %cst_3 = arith.constant 1.562500e-02 : f32
    %10 = vector.broadcast %cst_3 : f32 to vector<1x32xf32>
    %11 = arith.mulf %9, %10 : vector<1x32xf32>
    %c0_4 = arith.constant 0 : index
    %c0_5 = arith.constant 0 : index
    %12 = vector.load %arg1[%c0_4, %c0_5] : memref<1x32xf32, #tpu.memory_space<vmem>>, vector<1x32xf32>
    %cst_6 = arith.constant 9.99999974E-6 : f32
    %13 = vector.broadcast %cst_6 : f32 to vector<1x32xf32>
    %14 = arith.addf %11, %13 : vector<1x32xf32>
    %15 = math.rsqrt %14 : vector<1x32xf32>
    %16 = arith.mulf %12, %15 : vector<1x32xf32>
    %17 = vector.broadcast %16 : vector<1x32xf32> to vector<64x32xf32>
    %18 = arith.mulf %6, %17 : vector<64x32xf32>
    %c0_7 = arith.constant 0 : index
    %c0_8 = arith.constant 0 : index
    %19 = vector.load %arg2[%c0_7, %c0_8] : memref<1x32xf32, #tpu.memory_space<vmem>>, vector<1x32xf32>
    %20 = vector.broadcast %19 : vector<1x32xf32> to vector<64x32xf32>
    %21 = arith.addf %18, %20 : vector<64x32xf32>
    %c0_9 = arith.constant 0 : index
    %c0_10 = arith.constant 0 : index
    %22 = vector.load %arg3[%c0_9, %c0_10] : memref<64x32xf32, #tpu.memory_space<vmem>>, vector<64x32xf32>
    tpu.vector_store %arg3[%c0_9, %c0_10], %21 {strides = array<i32>} : memref<64x32xf32, #tpu.memory_space<vmem>>, vector<64x32xf32>,
    %c0_11 = arith.constant 0 : index
    %c0_12 = arith.constant 0 : index
    %23 = vector.load %arg4[%c0_11, %c0_12] : memref<1x32xf32, #tpu.memory_space<vmem>>, vector<1x32xf32>
    tpu.vector_store %arg4[%c0_11, %c0_12], %4 {strides = array<i32>} : memref<1x32xf32, #tpu.memory_space<vmem>>, vector<1x32xf32>,
    %c0_13 = arith.constant 0 : index
    %c0_14 = arith.constant 0 : index
    %24 = vector.load %arg5[%c0_13, %c0_14] : memref<1x32xf32, #tpu.memory_space<vmem>>, vector<1x32xf32>
    tpu.vector_store %arg5[%c0_13, %c0_14], %11 {strides = array<i32>} : memref<1x32xf32, #tpu.memory_space<vmem>>, vector<1x32xf32>,
    return
  }
}

</mosaic_0001>

<llo_original>
// kernel: tpu_custom_call.1
$region0: #{tpu_custom_call.1}
  #allocation0 [shape = 'u32[]', space=smem, size = 0x4, offset = 0x4, fixed_abs, tag = 'smem constant byte address 0x4 - core index']
  #allocation1 [shape = 'u32[144,128]{1,0:T(1,128)}', space=vmem, size = 0x12000, scoped, tag = 'internal scratch']
  %s0 = inlined_call_operand.vmem [shape: f32[64,32], index: 0, kind: input, shape index: {}]
  %s1 = inlined_call_operand.vmem [shape: f32[1,32], index: 1, kind: input, shape index: {}]
  %s2 = inlined_call_operand.vmem [shape: f32[1,32], index: 2, kind: input, shape index: {}]
  %s3 = inlined_call_operand.vmem [shape: f32[64,32], index: 3, kind: output, shape index: {0}]
  %s4 = inlined_call_operand.hbm [shape: f32[1,32], index: 4, kind: output, shape index: {1}]
  %s5 = inlined_call_operand.hbm [shape: f32[1,32], index: 5, kind: output, shape index: {2}]
  %6 = xla_tuple %s3, %s4, %s5
  %s7 = sld [smem:[#allocation0]]
  $region38: #{tpu_custom_call.1} parent=0
    _
  %s9 = ssub.s32 1, %s7
  %s10 = scalar_select 0, %s9, %s7
  $region1: #{tpu_custom_call.1} parent=0
    #allocation2 [shape = 'u8[512]{0}', space=vmem, size = 0x400, scoped, tag = 'output window, operand 1, single buffered']
    #allocation3 [shape = 's32[1]{0}', space=sflag, size = 0x4, scoped, tag = 'scoped memory for tpu_custom_call.1']
    #allocation4 [shape = 'u8[512]{0}', space=vmem, size = 0x400, scoped, tag = 'output window, operand 2, single buffered']
    #allocation5 [shape = 's32[1]{0}', space=sflag, size = 0x4, scoped, tag = 'scoped memory for tpu_custom_call.1']
    %11 = vsyncpa [#allocation3], 0
    %12 = vsyncpa [#allocation5], 0
    // Predicated region
    $region2: #{tpu_custom_call.1} parent=1 // pred_check
      _
    $region3: #{tpu_custom_call.1} parent=1 // pred_check_branch
      %14 = sbr.rel (0) target = $region5
    $region4: #{tpu_custom_call.1} parent=1 // pred_region
      _
    $region5: #{tpu_custom_call.1} parent=1 // pred_fallthru
      _
    // Predicated region
    $region6: #{tpu_custom_call.1} parent=1 // pred_check
      _
    $region7: #{tpu_custom_call.1} parent=1 // pred_check_branch
      %16 = sbr.rel (0) target = $region9
    $region8: #{tpu_custom_call.1} parent=1 // pred_region
      _
    $region9: #{tpu_custom_call.1} parent=1 // pred_fallthru
      _
    // Predicated region
    $region10: #{tpu_custom_call.1} parent=1 // pred_check
      _
    $region11: #{tpu_custom_call.1} parent=1 // pred_check_branch
      %18 = sbr.rel (0) target = $region13
    $region12: #{tpu_custom_call.1} parent=1 // pred_region
      _
    $region13: #{tpu_custom_call.1} parent=1 // pred_fallthru
      _
    %v19 = vld [vmem:[%s0] sm:$0xff]
    %v20 = vld [vmem:[%s0 + $0x8] sm:$0xff]
    %v21 = vld [vmem:[%s0 + $0x10] sm:$0xff]
    %v22 = vld [vmem:[%s0 + $0x18] sm:$0xff]
    %v23 = vld [vmem:[%s0 + $0x20] sm:$0xff]
    %v24 = vld [vmem:[%s0 + $0x28] sm:$0xff]
    %v25 = vld [vmem:[%s0 + $0x30] sm:$0xff]
    %v26 = vld [vmem:[%s0 + $0x38] sm:$0xff]
    %vm27 = vcmask 261120
    %v28 = vsel %vm27, %v19, 0.0
    %v29 = vsel %vm27, %v20, 0.0
    %v30 = vadd.f32 %v28, %v29
    %v31 = vsel %vm27, %v21, 0.0
    %v32 = vadd.f32 %v30, %v31
    %v33 = vsel %vm27, %v22, 0.0
    %v34 = vadd.f32 %v32, %v33
    %v35 = vsel %vm27, %v23, 0.0
    %v36 = vadd.f32 %v34, %v35
    %v37 = vsel %vm27, %v24, 0.0
    %v38 = vadd.f32 %v36, %v37
    %v39 = vsel %vm27, %v25, 0.0
    %v40 = vadd.f32 %v38, %v39
    %v41 = vsel %vm27, %v26, 0.0
    %v42 = vadd.f32 %v40, %v41
    %v43 = vrot.slane %v42, 4
    %v44 = vadd.f32 %v42, %v43
    %v45 = vrot.slane %v44, 2
    %v46 = vadd.f32 %v44, %v45
    %v47 = vrot.slane %v46, 1
    %v48 = vadd.f32 %v46, %v47
    %v49 = vmul.f32 %v48, 0.015625
    %v50 = vsub.f32 %v19, %v49
    %v51 = vsub.f32 %v20, %v49
    %v52 = vsub.f32 %v21, %v49
    %v53 = vsub.f32 %v22, %v49
    %v54 = vsub.f32 %v23, %v49
    %v55 = vsub.f32 %v24, %v49
    %v56 = vsub.f32 %v25, %v49
    %v57 = vsub.f32 %v26, %v49
    %v58 = vmul.f32 %v50, %v50
    %v59 = vmul.f32 %v51, %v51
    %v60 = vmul.f32 %v52, %v52
    %v61 = vmul.f32 %v53, %v53
    %v62 = vmul.f32 %v54, %v54
    %v63 = vmul.f32 %v55, %v55
    %v64 = vmul.f32 %v56, %v56
    %v65 = vmul.f32 %v57, %v57
    %v66 = vsel %vm27, %v58, 0.0
    %v67 = vsel %vm27, %v59, 0.0
    %v68 = vadd.f32 %v66, %v67
    %v69 = vsel %vm27, %v60, 0.0
    %v70 = vadd.f32 %v68, %v69
    %v71 = vsel %vm27, %v61, 0.0
    %v72 = vadd.f32 %v70, %v71
    %v73 = vsel %vm27, %v62, 0.0
    %v74 = vadd.f32 %v72, %v73
    %v75 = vsel %vm27, %v63, 0.0
    %v76 = vadd.f32 %v74, %v75
    %v77 = vsel %vm27, %v64, 0.0
    %v78 = vadd.f32 %v76, %v77
    %v79 = vsel %vm27, %v65, 0.0
    %v80 = vadd.f32 %v78, %v79
    %v81 = vrot.slane %v80, 4
    %v82 = vadd.f32 %v80, %v81
    %v83 = vrot.slane %v82, 2
    %v84 = vadd.f32 %v82, %v83
    %v85 = vrot.slane %v84, 1
    %v86 = vadd.f32 %v84, %v85
    %v87 = vmul.f32 %v86, 0.015625
    %v88 = vld [vmem:[%s1] sm:$0x1]
    %v89 = vadd.f32 %v87, 1e-05
    %v90 = vrsqrt.pop %v89
    %v91 = vmul.f32 %v88, %v90
    %v93 = vlaneseq
    %v94 = vshrl.u32 %v93, 7
    %v95 = vsub.s32 0, %v94
    %v96 = vrot.slane %v91, %v95
    %v98 = vmul.f32 %v50, %v96
    %v99 = vmul.f32 %v51, %v96
    %v100 = vmul.f32 %v52, %v96
    %v101 = vmul.f32 %v53, %v96
    %v102 = vmul.f32 %v54, %v96
    %v103 = vmul.f32 %v55, %v96
    %v104 = vmul.f32 %v56, %v96
    %v105 = vmul.f32 %v57, %v96
    %v106 = vld [vmem:[%s2] sm:$0x1]
    %v108 = vlaneseq
    %v109 = vshrl.u32 %v108, 7
    %v110 = vsub.s32 0, %v109
    %v111 = vrot.slane %v106, %v110
    %v113 = vadd.f32 %v98, %v111
    %v114 = vadd.f32 %v99, %v111
    %v115 = vadd.f32 %v100, %v111
    %v116 = vadd.f32 %v101, %v111
    %v117 = vadd.f32 %v102, %v111
    %v118 = vadd.f32 %v103, %v111
    %v119 = vadd.f32 %v104, %v111
    %v120 = vadd.f32 %v105, %v111
    %121 = vst.msk [vmem:[%s3] sm:$0xff] %vm27, %v113
    %122 = vst.msk [vmem:[%s3 + $0x8] sm:$0xff] %vm27, %v114
    %123 = vst.msk [vmem:[%s3 + $0x10] sm:$0xff] %vm27, %v115
    %124 = vst.msk [vmem:[%s3 + $0x18] sm:$0xff] %vm27, %v116
    %125 = vst.msk [vmem:[%s3 + $0x20] sm:$0xff] %vm27, %v117
    %126 = vst.msk [vmem:[%s3 + $0x28] sm:$0xff] %vm27, %v118
    %127 = vst.msk [vmem:[%s3 + $0x30] sm:$0xff] %vm27, %v119
    %128 = vst.msk [vmem:[%s3 + $0x38] sm:$0xff] %vm27, %v120
    %vm129 = vcmask 253952
    %130 = vst.msk [vmem:[#allocation2] sm:$0x1] %vm129, %v49
    %131 = vst.msk [vmem:[#allocation4] sm:$0x1] %vm129, %v87
    // Predicated region
    $region14: #{tpu_custom_call.1} parent=1 // pred_check
      _
    $region15: #{tpu_custom_call.1} parent=1 // pred_check_branch
      %133 = sbr.rel (0) target = $region17
    $region16: #{tpu_custom_call.1} parent=1 // pred_region
      _
    $region17: #{tpu_custom_call.1} parent=1 // pred_fallthru
      _
    // Predicated region
    $region18: #{tpu_custom_call.1} parent=1 // pred_check
      _
    $region19: #{tpu_custom_call.1} parent=1 // pred_check_branch
      %135 = sbr.rel (0) target = $region21
    $region20: #{tpu_custom_call.1} parent=1 // pred_region
      %s137 = ssub.s32 16, 16
      %138 = vsyncadd [#allocation3], %s137
      %s140 = sshll.u32 [#allocation2], 4
      %s141 = int_to_ptr.vmem [resolvable:$true] %s140
      %143 = dma.vmem_to_hbm [thread:$0]  %s141, 16, %s4, [#allocation3]
    $region21: #{tpu_custom_call.1} parent=1 // pred_fallthru
      _
    // Predicated region
    $region22: #{tpu_custom_call.1} parent=1 // pred_check
      _
    $region23: #{tpu_custom_call.1} parent=1 // pred_check_branch
      %145 = sbr.rel (0) target = $region25
    $region24: #{tpu_custom_call.1} parent=1 // pred_region
      %s147 = ssub.s32 16, 16
      %148 = vsyncadd [#allocation5], %s147
      %s150 = sshll.u32 [#allocation4], 4
      %s151 = int_to_ptr.vmem [resolvable:$true] %s150
      %153 = dma.vmem_to_hbm [thread:$0]  %s151, 16, %s5, [#allocation5]
    $region25: #{tpu_custom_call.1} parent=1 // pred_fallthru
      _
    // Predicated region
    $region26: #{tpu_custom_call.1} parent=1 // pred_check
      _
    $region27: #{tpu_custom_call.1} parent=1 // pred_check_branch
      %155 = sbr.rel (0) target = $region29
    $region28: #{tpu_custom_call.1} parent=1 // pred_region
      _
    $region29: #{tpu_custom_call.1} parent=1 // pred_fallthru
      _
    // Predicated region
    $region30: #{tpu_custom_call.1} parent=1 // pred_check
      _
    $region31: #{tpu_custom_call.1} parent=1 // pred_check_branch
      %157 = sbr.rel (0) target = $region33
    $region32: #{tpu_custom_call.1} parent=1 // pred_region
      %158 = dma.done [#allocation3], 16
    $region33: #{tpu_custom_call.1} parent=1 // pred_fallthru
      _
    // Predicated region
    $region34: #{tpu_custom_call.1} parent=1 // pred_check
      _
    $region35: #{tpu_custom_call.1} parent=1 // pred_check_branch
      %160 = sbr.rel (0) target = $region37
    $region36: #{tpu_custom_call.1} parent=1 // pred_region
      %161 = dma.done [#allocation5], 16
    $region37: #{tpu_custom_call.1} parent=1 // pred_fallthru
      _
    %162 = vsyncpa [#allocation3], 1
    %163 = vsyncpa [#allocation5], 1

</llo_original>
